<compile_context>
chip_gen: v7x
topology: tpu7x:2x2x1
jax: 0.10.0
libtpu: 0.0.40
codegen_flags: <defaults>
</compile_context>

<pallas_src>
import jax
import jax.numpy as jnp
from jax.experimental import pallas as pl
from jax.experimental.pallas import tpu as pltpu


def _round_up(x, m):
    return (x + m - 1) // m * m


def _pad2d(a, rows, cols, dtype):
    out = jnp.zeros((rows, cols), dtype=dtype)
    return out.at[: a.shape[0], : a.shape[1]].set(a.astype(dtype))


# ----------------------------------------------------------------------------- kernels
def _sae421_fused_kernel(x_ref, we_ref, be_ref, wf_ref, bd_ref, o_ref):
    # Encoder4: Linear + ReLU (MXU matmul, f32 accumulation; bias/ReLU on the VPU in f32).
    x = x_ref[...].astype(we_ref.dtype)
    h = jnp.dot(x, we_ref[...], preferred_element_type=jnp.float32)
    h = jnp.maximum(h + be_ref[...], 0.0)
    # einsum('ik,kj->ij', h, D) followed by Decoder21's Linear, pre-fused into W_fused = D @ Wd.
    z = jnp.dot(h.astype(wf_ref.dtype), wf_ref[...], preferred_element_type=jnp.float32)
    # Decoder21: bias + Sigmoid (f32; sigmoid goes to the EUP).
    o_ref[...] = jax.nn.sigmoid(z + bd_ref[...]).astype(o_ref.dtype)


def _sae421_factored_kernel(x_ref, we_ref, be_ref, d_ref, wd_ref, bd_ref, o_ref):
    # Same math, but keeps h@D and @Wd separate (used when out_f < in_f).
    x = x_ref[...].astype(we_ref.dtype)
    h = jnp.dot(x, we_ref[...], preferred_element_type=jnp.float32)
    h = jnp.maximum(h + be_ref[...], 0.0)
    z = jnp.dot(h.astype(d_ref.dtype), d_ref[...], preferred_element_type=jnp.float32)
    y = jnp.dot(z.astype(wd_ref.dtype), wd_ref[...], preferred_element_type=jnp.float32)
    o_ref[...] = jax.nn.sigmoid(y + bd_ref[...]).astype(o_ref.dtype)


# ----------------------------------------------------------------------------- parameter prep
def sae421_prepare(We, be, D, Wd, bd, *, compute_dtype=jnp.bfloat16, fuse=None):
    """Call ONCE at parameter load/update time (hoisted out of the per-step forward).

    We: [in_f, in_f] (stored (in, out)); be: [in_f] or [1, in_f]; D: [in_f, out_f];
    Wd: [out_f, in_f]; bd: [in_f] or [1, in_f].
    compute_dtype: MXU operand dtype (bf16 is fast on v5e/v6e/v7x; f32 for exactness).
    Note: with bf16 the fused Wf = D@Wd is rounded once after the f32 accumulation; if that
    rounding matters, pass fuse=False or compute_dtype=jnp.float32."""
    in_f = We.shape[0]
    out_f = D.shape[1]
    F = _round_up(in_f, 128)          # lane-dense feature axis (unmasked vst on the output)
    if fuse is None:
        fuse = out_f >= in_f          # fused weight [in_f,in_f] is smaller & cheaper iff out_f>=in_f
    params = {
        "in_f": in_f, "out_f": out_f, "F": F, "fused": bool(fuse),
        "compute_dtype": jnp.dtype(compute_dtype),
        "We": _pad2d(We, F, F, compute_dtype),
        "be": _pad2d(jnp.asarray(be).reshape(1, -1), 1, F, jnp.float32),
        "bd": _pad2d(jnp.asarray(bd).reshape(1, -1), 1, F, jnp.float32),
    }
    if fuse:
        # Exact algebraic fusion: no nonlinearity between (h @ D) and the decoder Linear and x2
        # is never an exposed output, so only the f32 summation order changes.
        Wf = jnp.dot(D.astype(jnp.float32), Wd.astype(jnp.float32),
                     preferred_element_type=jnp.float32)              # [in_f, in_f]
        params["Wf"] = _pad2d(Wf, F, F, compute_dtype)
    else:
        Fo = _round_up(out_f, 128)
        params["Fo"] = Fo
        params["D"] = _pad2d(D, F, Fo, compute_dtype)
        params["Wd"] = _pad2d(Wd, Fo, F, compute_dtype)
    return params


# ----------------------------------------------------------------------------- forward
def sae421_forward(x, params, *, batch_tile=256, out_dtype=jnp.float32):
    """x: [B, in_f] -> [B, in_f].  batch_tile: rows per grid step (256 v6e/v7x, 128-256 v5e)."""
    B, in_f = x.shape
    assert in_f == params["in_f"], "x feature dim does not match prepared parameters"
    F = params["F"]
    fused = params["fused"]
    cdt = params["compute_dtype"]

    # ---- activation streaming dtype: narrow to the compute dtype when that saves HBM bandwidth.
    stream_dtype = cdt if jnp.dtype(cdt).itemsize < jnp.dtype(x.dtype).itemsize else jnp.dtype(x.dtype)
    x_item = jnp.dtype(stream_dtype).itemsize
    o_item = jnp.dtype(out_dtype).itemsize
    sub = 8 if (x_item == 4 and o_item == 4) else 16   # sublane alignment (f32: 8, bf16/f16: 16)

    # ---- minimal activation padding: batch only to the sublane multiple, features to 128.
    # No wrapper copy at all when the caller already provides aligned shapes.
    B_pad = _round_up(max(B, sub), sub)
    needs_pad = (B_pad != B) or (F != in_f)
    if needs_pad:
        x_in = jnp.zeros((B_pad, F), stream_dtype).at[:B, :in_f].set(x.astype(stream_dtype))
    elif stream_dtype != x.dtype:
        x_in = x.astype(stream_dtype)
    else:
        x_in = x

    # ---- batch tile: sublane aligned; split so the v7x second TensorCore gets work (>=2 steps).
    bt = max(sub, (int(batch_tile) // sub) * sub)
    bt = min(bt, B_pad)
    if B_pad // bt < 2 and B_pad >= 2 * sub:
        bt = max(sub, (B_pad // 2) // sub * sub)

    # ---- per-generation VMEM budget (v5e/v6e: 128 MiB physical -> 96 MiB; v7x: 64 -> 48 MiB).
    try:
        vmem_cap = int(pltpu.get_tpu_info().vmem_capacity_bytes)
    except Exception:
        vmem_cap = 64 * 1024 * 1024
    vmem_limit = min(vmem_cap * 3 // 4, 96 * 1024 * 1024)

    wt_item = jnp.dtype(cdt).itemsize
    if fused:
        weight_bytes = 2 * F * F * wt_item + 2 * F * 4
    else:
        Fo = params["Fo"]
        weight_bytes = (F * F + 2 * F * Fo) * wt_item + 2 * F * 4

    def _act_bytes(btile):
        # double-buffered x / out tiles + rough allowance for the in-kernel f32 intermediates
        if fused:
            inter = 2 * btile * F * 4
        else:
            inter = btile * (F + params["Fo"]) * 4 + btile * F * 4
        return 2 * btile * F * (x_item + o_item) + inter

    while bt > sub and weight_bytes + _act_bytes(bt) > vmem_limit:
        bt = max(sub, (bt // 2) // sub * sub)
    # TODO(synk): if weight_bytes alone exceeds vmem_limit (very wide SAE on v7x), a K/N-tiled
    #             grid with an f32 accumulator scratch is required instead of resident weights.

    grid = (pl.cdiv(B_pad, bt),)
    const = pl.Buffered(1)   # constant-index weights: single VMEM buffer, fetched once

    if fused:
        kernel = _sae421_fused_kernel
        operands = (x_in, params["We"], params["be"], params["Wf"], params["bd"])
        in_specs = [
            pl.BlockSpec((bt, F), lambda i: (i, 0)),                              # x (pipelined)
            pl.BlockSpec((F, F), lambda i: (0, 0), pipeline_mode=const),          # We
            pl.BlockSpec((1, F), lambda i: (0, 0), pipeline_mode=const),          # be
            pl.BlockSpec((F, F), lambda i: (0, 0), pipeline_mode=const),          # W_fused = D@Wd
            pl.BlockSpec((1, F), lambda i: (0, 0), pipeline_mode=const),          # bd
        ]
        flops = 4 * B_pad * F * F
    else:
        Fo = params["Fo"]
        kernel = _sae421_factored_kernel
        operands = (x_in, params["We"], params["be"], params["D"], params["Wd"], params["bd"])
        in_specs = [
            pl.BlockSpec((bt, F), lambda i: (i, 0)),                              # x (pipelined)
            pl.BlockSpec((F, F), lambda i: (0, 0), pipeline_mode=const),          # We
            pl.BlockSpec((1, F), lambda i: (0, 0), pipeline_mode=const),          # be
            pl.BlockSpec((F, Fo), lambda i: (0, 0), pipeline_mode=const),         # D
            pl.BlockSpec((Fo, F), lambda i: (0, 0), pipeline_mode=const),         # Wd
            pl.BlockSpec((1, F), lambda i: (0, 0), pipeline_mode=const),          # bd
        ]
        flops = 2 * B_pad * F * F + 4 * B_pad * F * Fo

    cost = pl.CostEstimate(
        flops=int(flops),
        transcendentals=int(B_pad * F),                                           # sigmoid
        bytes_accessed=int(B_pad * F * (x_item + o_item) + weight_bytes),
    )

    out = pl.pallas_call(
        kernel,
        out_shape=jax.ShapeDtypeStruct((B_pad, F), out_dtype),
        grid_spec=pltpu.PrefetchScalarGridSpec(
            num_scalar_prefetch=0,
            grid=grid,
            in_specs=in_specs,
            out_specs=pl.BlockSpec((bt, F), lambda i: (i, 0)),
        ),
        compiler_params=pltpu.CompilerParams(
            dimension_semantics=("parallel",),   # batch axis shards across both TCs on v7x
            vmem_limit_bytes=int(vmem_limit),
        ),
        cost_estimate=cost,
    )(*operands)

    if needs_pad:
        out = out[:B, :in_f]
    return out


# ----------------------------------------------------------------------------- reference
def sae421_reference(x, We, be, D, Wd, bd):
    h = jnp.maximum(x @ We + be, 0.0)
    z = h @ D                             # einsum('ik,kj->ij', h, D)
    return jax.nn.sigmoid(z @ Wd + bd)


if __name__ == "__main__":
    key = jax.random.PRNGKey(0)
    ks = jax.random.split(key, 12)

    # ---- fused path (SAE421 defaults: in_features=32, out_features=256; out_f >= in_f) --------
    B, IN_F, OUT_F = 48, 32, 256
    x  = jax.random.normal(ks[0], (B, IN_F), dtype=jnp.float32)
    We = jax.random.normal(ks[1], (IN_F, IN_F), dtype=jnp.float32) * (1.0 / jnp.sqrt(IN_F))
    be = jax.random.normal(ks[2], (1, IN_F), dtype=jnp.float32) * 0.01
    D  = jax.random.normal(ks[3], (IN_F, OUT_F), dtype=jnp.float32) * (1.0 / jnp.sqrt(IN_F))
    Wd = jax.random.normal(ks[4], (OUT_F, IN_F), dtype=jnp.float32) * (1.0 / jnp.sqrt(OUT_F))
    bd = jax.random.normal(ks[5], (1, IN_F), dtype=jnp.float32) * 0.01

    ref = sae421_reference(x, We, be, D, Wd, bd)

    # Exact f32 path.
    p_f32 = sae421_prepare(We, be, D, Wd, bd, compute_dtype=jnp.float32)
    y_f32 = jax.block_until_ready(sae421_forward(x, p_f32))
    assert y_f32.shape == (B, IN_F)
    assert jnp.allclose(y_f32, ref, atol=1e-4, rtol=1e-4), "f32 fused kernel mismatch"

    # bf16 MXU operands, f32 accumulation / elementwise (fast path on v5e/v6e/v7x).
    p_bf16 = sae421_prepare(We, be, D, Wd, bd, compute_dtype=jnp.bfloat16)
    y_bf16 = jax.block_until_ready(sae421_forward(x, p_bf16))
    assert y_bf16.shape == (B, IN_F)
    assert jnp.allclose(y_bf16, ref, atol=5e-2, rtol=5e-2), "bf16 fused kernel mismatch"

    # ---- factored path (out_f < in_f: keep h@D and @Wd separate) ------------------------------
    B2, IN2, OUT2 = 16, 64, 16
    x2  = jax.random.normal(ks[6], (B2, IN2), dtype=jnp.float32)
    We2 = jax.random.normal(ks[7], (IN2, IN2), dtype=jnp.float32) * (1.0 / jnp.sqrt(IN2))
    be2 = jax.random.normal(ks[8], (1, IN2), dtype=jnp.float32) * 0.01
    D2  = jax.random.normal(ks[9], (IN2, OUT2), dtype=jnp.float32) * (1.0 / jnp.sqrt(IN2))
    Wd2 = jax.random.normal(ks[10], (OUT2, IN2), dtype=jnp.float32) * (1.0 / jnp.sqrt(OUT2))
    bd2 = jax.random.normal(ks[11], (1, IN2), dtype=jnp.float32) * 0.01

    ref2 = sae421_reference(x2, We2, be2, D2, Wd2, bd2)
    p2 = sae421_prepare(We2, be2, D2, Wd2, bd2, compute_dtype=jnp.float32)
    y2 = jax.block_until_ready(sae421_forward(x2, p2))
    assert y2.shape == (B2, IN2)
    assert jnp.allclose(y2, ref2, atol=1e-4, rtol=1e-4), "f32 factored kernel mismatch"

    print("KERNEL_OK")
</pallas_src>

<mosaic_0001>
module attributes {stable_mosaic.version = 11 : i64} {
  func.func @_sae421_fused_kernel(%arg0: i32, %arg1: memref<24x128xf32, #tpu.memory_space<vmem>>, %arg2: memref<128x128xf32, #tpu.memory_space<vmem>>, %arg3: memref<1x128xf32, #tpu.memory_space<vmem>>, %arg4: memref<128x128xf32, #tpu.memory_space<vmem>>, %arg5: memref<1x128xf32, #tpu.memory_space<vmem>>, %arg6: memref<24x128xf32, #tpu.memory_space<vmem>>) attributes {dimension_semantics = [#tpu.dimension_semantics<parallel>], iteration_bounds = array<i64: 2>, scalar_prefetch = 0 : i64, scratch_operands = 0 : i64, tpu.core_type = #tpu.core_type<tc>, window_params = [{transform_indices = @transform_0, window_bounds = array<i64: 24, 128>}, {pipeline_mode = #tpu.pipeline_mode<synchronous>, transform_indices = @transform_1, window_bounds = array<i64: 128, 128>}, {pipeline_mode = #tpu.pipeline_mode<synchronous>, transform_indices = @transform_2, window_bounds = array<i64: 1, 128>}, {pipeline_mode = #tpu.pipeline_mode<synchronous>, transform_indices = @transform_3, window_bounds = array<i64: 128, 128>}, {pipeline_mode = #tpu.pipeline_mode<synchronous>, transform_indices = @transform_4, window_bounds = array<i64: 1, 128>}, {transform_indices = @transform_5, window_bounds = array<i64: 24, 128>}]} {
    %c0 = arith.constant 0 : index
    %c0_0 = arith.constant 0 : index
    %0 = vector.load %arg1[%c0, %c0_0] : memref<24x128xf32, #tpu.memory_space<vmem>>, vector<24x128xf32>
    %c0_1 = arith.constant 0 : index
    %c0_2 = arith.constant 0 : index
    %1 = vector.load %arg2[%c0_1, %c0_2] : memref<128x128xf32, #tpu.memory_space<vmem>>, vector<128x128xf32>
    %cst = arith.constant dense<0.000000e+00> : vector<24x128xf32>
    %2 = tpu.matmul %0, %1, %cst {dimension_numbers = #tpu.dot_dimension_numbers<[1], [0], [0], [1], [0, 0, 1, 1], [], []>} : vector<24x128xf32>, vector<128x128xf32>, vector<24x128xf32> -> vector<24x128xf32>
    %c0_3 = arith.constant 0 : index
    %c0_4 = arith.constant 0 : index
    %3 = vector.load %arg3[%c0_3, %c0_4] : memref<1x128xf32, #tpu.memory_space<vmem>>, vector<1x128xf32>
    %4 = vector.broadcast %3 : vector<1x128xf32> to vector<24x128xf32>
    %5 = arith.addf %2, %4 : vector<24x128xf32>
    %cst_5 = arith.constant 0.000000e+00 : f32
    %6 = vector.broadcast %cst_5 : f32 to vector<24x128xf32>
    %7 = arith.maximumf %5, %6 : vector<24x128xf32>
    %c0_6 = arith.constant 0 : index
    %c0_7 = arith.constant 0 : index
    %8 = vector.load %arg4[%c0_6, %c0_7] : memref<128x128xf32, #tpu.memory_space<vmem>>, vector<128x128xf32>
    %cst_8 = arith.constant dense<0.000000e+00> : vector<24x128xf32>
    %9 = tpu.matmul %7, %8, %cst_8 {dimension_numbers = #tpu.dot_dimension_numbers<[1], [0], [0], [1], [0, 0, 1, 1], [], []>} : vector<24x128xf32>, vector<128x128xf32>, vector<24x128xf32> -> vector<24x128xf32>
    %c0_9 = arith.constant 0 : index
    %c0_10 = arith.constant 0 : index
    %10 = vector.load %arg5[%c0_9, %c0_10] : memref<1x128xf32, #tpu.memory_space<vmem>>, vector<1x128xf32>
    %11 = vector.broadcast %10 : vector<1x128xf32> to vector<24x128xf32>
    %12 = arith.addf %9, %11 : vector<24x128xf32>
    %13 = arith.negf %12 : vector<24x128xf32>
    %14 = math.exp %13 : vector<24x128xf32>
    %cst_11 = arith.constant 1.000000e+00 : f32
    %15 = vector.broadcast %cst_11 : f32 to vector<24x128xf32>
    %16 = arith.addf %15, %14 : vector<24x128xf32>
    %17 = arith.divf %15, %16 : vector<24x128xf32>
    %c0_12 = arith.constant 0 : index
    %c0_13 = arith.constant 0 : index
    %18 = vector.load %arg6[%c0_12, %c0_13] : memref<24x128xf32, #tpu.memory_space<vmem>>, vector<24x128xf32>
    tpu.vector_store %arg6[%c0_12, %c0_13], %17 {strides = array<i32>} : memref<24x128xf32, #tpu.memory_space<vmem>>, vector<24x128xf32>,
    return
  }
  func.func @transform_0(%arg0: i32) -> (i32, i32) {
    %c0_i32 = arith.constant 0 : i32
    %c0_i32_0 = arith.constant 0 : i32
    return %arg0, %c0_i32 : i32, i32
  }
  func.func @transform_1(%arg0: i32) -> (i32, i32) {
    %c0_i32 = arith.constant 0 : i32
    %c0_i32_0 = arith.constant 0 : i32
    %c0_i32_1 = arith.constant 0 : i32
    return %c0_i32, %c0_i32_0 : i32, i32
  }
  func.func @transform_2(%arg0: i32) -> (i32, i32) {
    %c0_i32 = arith.constant 0 : i32
    %c0_i32_0 = arith.constant 0 : i32
    %c0_i32_1 = arith.constant 0 : i32
    return %c0_i32, %c0_i32_0 : i32, i32
  }
  func.func @transform_3(%arg0: i32) -> (i32, i32) {
    %c0_i32 = arith.constant 0 : i32
    %c0_i32_0 = arith.constant 0 : i32
    %c0_i32_1 = arith.constant 0 : i32
    return %c0_i32, %c0_i32_0 : i32, i32
  }
  func.func @transform_4(%arg0: i32) -> (i32, i32) {
    %c0_i32 = arith.constant 0 : i32
    %c0_i32_0 = arith.constant 0 : i32
    %c0_i32_1 = arith.constant 0 : i32
    return %c0_i32, %c0_i32_0 : i32, i32
  }
  func.func @transform_5(%arg0: i32) -> (i32, i32) {
    %c0_i32 = arith.constant 0 : i32
    %c0_i32_0 = arith.constant 0 : i32
    return %arg0, %c0_i32 : i32, i32
  }
}

</mosaic_0001>

<llo_original>
// kernel: tpu_custom_call.1
$region0: #{tpu_custom_call.1}
  #allocation0 [shape = 'u32[]', space=smem, size = 0x4, offset = 0x4, fixed_abs, tag = 'smem constant byte address 0x4 - core index']
  #allocation1 [shape = 'u32[144,128]{1,0:T(1,128)}', space=vmem, size = 0x12000, scoped, tag = 'internal scratch']
  %s0 = inlined_call_operand.hbm [shape: f32[48,128], index: 0, kind: input, shape index: {}]
  %s1 = inlined_call_operand.hbm [shape: f32[128,128], index: 1, kind: input, shape index: {}]
  %s2 = inlined_call_operand.vmem [shape: f32[1,128], index: 2, kind: input, shape index: {}]
  %s3 = inlined_call_operand.hbm [shape: f32[128,128], index: 3, kind: input, shape index: {}]
  %s4 = inlined_call_operand.vmem [shape: f32[1,128], index: 4, kind: input, shape index: {}]
  %s5 = inlined_call_operand.hbm [shape: f32[48,128], index: 5, kind: output, shape index: {}]
  %s6 = sld [smem:[#allocation0]]
  $region65: #{tpu_custom_call.1} parent=0
    _
  %s8 = ssub.s32 1, %s6
  %s9 = scalar_select 0, %s8, %s6
  $region1: #{tpu_custom_call.1} parent=0
    #allocation2 [shape = 'u8[24576]{0}', space=vmem, size = 0x6000, scoped, tag = 'input window, operand 0']
    #allocation3 [shape = 's32[2]{0}', space=sflag, size = 0x8, scoped, tag = 'scoped memory for tpu_custom_call.1']
    #allocation4 [shape = 's32[2]{0}', space=sflag, size = 0x8, scoped, tag = 'scoped memory for tpu_custom_call.1']
    #allocation5 [shape = 'u8[65536]{0}', space=vmem, size = 0x10000, scoped, tag = 'input window, operand 1, single buffered']
    #allocation6 [shape = 's32[1]{0}', space=sflag, size = 0x4, scoped, tag = 'scoped memory for tpu_custom_call.1']
    #allocation7 [shape = 'u8[65536]{0}', space=vmem, size = 0x10000, scoped, tag = 'input window, operand 3, single buffered']
    #allocation8 [shape = 'u8[24576]{0}', space=vmem, size = 0x6000, scoped, tag = 'output window, operand 0']
    %10 = vsyncpa [#allocation3], 0
    %s11 = scalar_lea.sflag [#allocation3], 1
    %12 = vsyncpa %s11, 0
    %13 = vsyncpa [#allocation6], 0
    %14 = vsyncpa [#allocation4], 0
    %s15 = scalar_lea.sflag [#allocation4], 1
    %16 = vsyncpa %s15, 0
    loop: start=0, step=1, limit=4
    $region2: #{tpu_custom_call.1} parent=1 // loop_pre_header
      _
    $region3: #{tpu_custom_call.1} parent=1 // loop_header
      %s18 = sphi 0, %s22
      %p19 = scmp.ge.s32.totalorder %s18, 4
      %s28 = sphi 0, %s30
      %s31 = sphi 0, %s28
      %s32 = sphi 0, %s31
      %s48 = sphi 0, %s32
      %s52 = sphi 0, %s52
      %s54 = sphi 0, %s52
      %s55 = sphi 0, %s54
      %s69 = sphi 0, %s55
      %s73 = sphi 0, %s73
      %s75 = sphi 0, %s73
      %s76 = sphi 0, %s75
      %s90 = sphi 0, %s76
      %s94 = sphi 0, %s94
      %s96 = sphi 0, %s94
      %s97 = sphi 0, %s96
      %s111 = sphi 0, %s97
      %s115 = sphi 0, %s115
      %s117 = sphi 0, %s115
      %s118 = sphi 0, %s117
      %s132 = sphi 0, %s118
      %s138 = sphi 0, %s140
      %s141 = sphi 0, %s138
      %s142 = sphi 0, %s141
      %s158 = sphi 0, %s142
    $region4: #{tpu_custom_call.1} parent=1 // loop_header_branch
      %21 = sbr.rel (%p19) target = $region8
    $region5: #{tpu_custom_call.1} parent=1 // loop_body
      %s23 = ssub.s32 %s18, 1
      %s24 = ssub.s32 %s18, 2
      %s25 = sadd.s32 %s18, 1
      %s26 = ssub.s32 %s18, %s25
      %p27 = scmp.eq.s32.totalorder %s26, 0
      %s29 = sadd.s32 %s28, 1
      %s30 = scalar_select %p27, %s28, %s29
      %p33 = pneg %p27
      %p34 = scmp.eq.s32.totalorder %s18, 1
      %p35 = por %p33, %p34
      %p36 = scmp.ne.s32.totalorder %s28, %s31
      %p37 = scmp.eq.s32.totalorder %s18, 0
      %p38 = por %p36, %p37
      %p39 = scmp.ne.s32.totalorder %s28, %s31
      %p40 = scmp.eq.s32.totalorder %s23, 1
      %p41 = por %p39, %p40
      %p42 = scmp.ne.s32.totalorder %s31, %s32
      %p43 = scmp.eq.s32.totalorder %s23, 0
      %p44 = por %p42, %p43
      %p45 = scmp.ne.s32.totalorder %s31, %s32
      %p46 = scmp.eq.s32.totalorder %s24, 1
      %p47 = por %p45, %p46
      %p49 = scmp.ne.s32.totalorder %s32, %s48
      %p50 = scmp.eq.s32.totalorder %s24, 0
      %p51 = por %p49, %p50
      %s53 = sadd.s32 %s52, 1
      %p56 = scmp.eq.s32.totalorder %s18, 1
      %p57 = scmp.ne.s32.totalorder %s52, %s54
      %p58 = scmp.eq.s32.totalorder %s18, 0
      %p59 = por %p57, %p58
      %p60 = scmp.ne.s32.totalorder %s52, %s54
      %p61 = scmp.eq.s32.totalorder %s23, 1
      %p62 = por %p60, %p61
      %p63 = scmp.ne.s32.totalorder %s54, %s55
      %p64 = scmp.eq.s32.totalorder %s23, 0
      %p65 = por %p63, %p64
      %p66 = scmp.ne.s32.totalorder %s54, %s55
      %p67 = scmp.eq.s32.totalorder %s24, 1
      %p68 = por %p66, %p67
      %p70 = scmp.ne.s32.totalorder %s55, %s69
      %p71 = scmp.eq.s32.totalorder %s24, 0
      %p72 = por %p70, %p71
      %s74 = sadd.s32 %s73, 1
      %p77 = scmp.eq.s32.totalorder %s18, 1
      %p78 = scmp.ne.s32.totalorder %s73, %s75
      %p79 = scmp.eq.s32.totalorder %s18, 0
      %p80 = por %p78, %p79
      %p81 = scmp.ne.s32.totalorder %s73, %s75
      %p82 = scmp.eq.s32.totalorder %s23, 1
      %p83 = por %p81, %p82
      %p84 = scmp.ne.s32.totalorder %s75, %s76
      %p85 = scmp.eq.s32.totalorder %s23, 0
      %p86 = por %p84, %p85
      %p87 = scmp.ne.s32.totalorder %s75, %s76
      %p88 = scmp.eq.s32.totalorder %s24, 1
      %p89 = por %p87, %p88
      %p91 = scmp.ne.s32.totalorder %s76, %s90
      %p92 = scmp.eq.s32.totalorder %s24, 0
      %p93 = por %p91, %p92
      %s95 = sadd.s32 %s94, 1
      %p98 = scmp.eq.s32.totalorder %s18, 1
      %p99 = scmp.ne.s32.totalorder %s94, %s96
      %p100 = scmp.eq.s32.totalorder %s18, 0
      %p101 = por %p99, %p100
      %p102 = scmp.ne.s32.totalorder %s94, %s96
      %p103 = scmp.eq.s32.totalorder %s23, 1
      %p104 = por %p102, %p103
      %p105 = scmp.ne.s32.totalorder %s96, %s97
      %p106 = scmp.eq.s32.totalorder %s23, 0
      %p107 = por %p105, %p106
      %p108 = scmp.ne.s32.totalorder %s96, %s97
      %p109 = scmp.eq.s32.totalorder %s24, 1
      %p110 = por %p108, %p109
      %p112 = scmp.ne.s32.totalorder %s97, %s111
      %p113 = scmp.eq.s32.totalorder %s24, 0
      %p114 = por %p112, %p113
      %s116 = sadd.s32 %s115, 1
      %p119 = scmp.eq.s32.totalorder %s18, 1
      %p120 = scmp.ne.s32.totalorder %s115, %s117
      %p121 = scmp.eq.s32.totalorder %s18, 0
      %p122 = por %p120, %p121
      %p123 = scmp.ne.s32.totalorder %s115, %s117
      %p124 = scmp.eq.s32.totalorder %s23, 1
      %p125 = por %p123, %p124
      %p126 = scmp.ne.s32.totalorder %s117, %s118
      %p127 = scmp.eq.s32.totalorder %s23, 0
      %p128 = por %p126, %p127
      %p129 = scmp.ne.s32.totalorder %s117, %s118
      %p130 = scmp.eq.s32.totalorder %s24, 1
      %p131 = por %p129, %p130
      %p133 = scmp.ne.s32.totalorder %s118, %s132
      %p134 = scmp.eq.s32.totalorder %s24, 0
      %p135 = por %p133, %p134
      %s136 = ssub.s32 %s18, %s25
      %p137 = scmp.eq.s32.totalorder %s136, 0
      %s139 = sadd.s32 %s138, 1
      %s140 = scalar_select %p137, %s138, %s139
      %p143 = pneg %p137
      %p144 = scmp.eq.s32.totalorder %s18, 1
      %p145 = por %p143, %p144
      %p146 = scmp.ne.s32.totalorder %s138, %s141
      %p147 = scmp.eq.s32.totalorder %s18, 0
      %p148 = por %p146, %p147
      %p149 = scmp.ne.s32.totalorder %s138, %s141
      %p150 = scmp.eq.s32.totalorder %s23, 1
      %p151 = por %p149, %p150
      %p152 = scmp.ne.s32.totalorder %s141, %s142
      %p153 = scmp.eq.s32.totalorder %s23, 0
      %p154 = por %p152, %p153
      %p155 = scmp.ne.s32.totalorder %s141, %s142
      %p156 = scmp.eq.s32.totalorder %s24, 1
      %p157 = por %p155, %p156
      %p159 = scmp.ne.s32.totalorder %s142, %s158
      %p160 = scmp.eq.s32.totalorder %s24, 0
      %p161 = por %p159, %p160
      %p162 = scmp.le.s32.totalorder 1, %s18
      %p163 = scmp.lt.s32.totalorder %s18, 3
      %p164 = pnand %p162, %p163
      %p165 = pneg %p164
      // Predicated region
      $region9: #{tpu_custom_call.1} parent=5 // pred_check
        _
      $region10: #{tpu_custom_call.1} parent=5 // pred_check_branch
        %167 = sbr.rel (%p164) target = $region12
      $region11: #{tpu_custom_call.1} parent=5 // pred_region
        %s168 = ssub.s32 %s18, 1
        // Predicated region
        $region13: #{tpu_custom_call.1} parent=11 // pred_check
          %p169 = pneg %p65
        $region14: #{tpu_custom_call.1} parent=11 // pred_check_branch
          %171 = sbr.rel (%p169) target = $region16
        $region15: #{tpu_custom_call.1} parent=11 // pred_region
          %s173 = ssub.s32 2048, 2048
          %174 = vsyncadd [#allocation6], %s173
          %s175 = sshll.u32 [#allocation5], 4
          %s176 = int_to_ptr.vmem [resolvable:$true] %s175
          %181 = dma.hbm_to_vmem [thread:$0]  %s1, 2048, %s176, [#allocation6], 128, 128, 8
        $region16: #{tpu_custom_call.1} parent=11 // pred_fallthru
          _
        // Predicated region
        $region17: #{tpu_custom_call.1} parent=11 // pred_check
          %p182 = pneg %p86
        $region18: #{tpu_custom_call.1} parent=11 // pred_check_branch
          %184 = sbr.rel (%p182) target = $region20
        $region19: #{tpu_custom_call.1} parent=11 // pred_region
          _
        $region20: #{tpu_custom_call.1} parent=11 // pred_fallthru
          _
        // Predicated region
        $region21: #{tpu_custom_call.1} parent=11 // pred_check
          %p185 = pneg %p107
        $region22: #{tpu_custom_call.1} parent=11 // pred_check_branch
          %187 = sbr.rel (%p185) target = $region24
        $region23: #{tpu_custom_call.1} parent=11 // pred_region
          %s189 = ssub.s32 2048, 2048
          %190 = vsyncadd [#allocation6], %s189
          %s191 = sshll.u32 [#allocation7], 4
          %s192 = int_to_ptr.vmem [resolvable:$true] %s191
          %197 = dma.hbm_to_vmem [thread:$0]  %s3, 2048, %s192, [#allocation6], 128, 128, 8
        $region24: #{tpu_custom_call.1} parent=11 // pred_fallthru
          _
        // Predicated region
        $region25: #{tpu_custom_call.1} parent=11 // pred_check
          %p198 = pneg %p128
        $region26: #{tpu_custom_call.1} parent=11 // pred_check_branch
          %200 = sbr.rel (%p198) target = $region28
        $region27: #{tpu_custom_call.1} parent=11 // pred_region
          _
        $region28: #{tpu_custom_call.1} parent=11 // pred_fallthru
          _
      $region12: #{tpu_custom_call.1} parent=5 // pred_fallthru
        _
      %p201 = scmp.lt.s32.totalorder %s18, 2
      // Predicated region
      $region29: #{tpu_custom_call.1} parent=5 // pred_check
        %p202 = pneg %p201
      $region30: #{tpu_custom_call.1} parent=5 // pred_check_branch
        %204 = sbr.rel (%p202) target = $region32
      $region31: #{tpu_custom_call.1} parent=5 // pred_region
        // Predicated region
        $region33: #{tpu_custom_call.1} parent=31 // pred_check
          %p205 = pneg %p38
        $region34: #{tpu_custom_call.1} parent=31 // pred_check_branch
          %207 = sbr.rel (%p205) target = $region36
        $region35: #{tpu_custom_call.1} parent=31 // pred_region
          %s208 = sand.u32 %s28, 1
          %s209 = scalar_lea.sflag [#allocation3], %s208
          %s210 = sand.u32 %s28, 1
          %s211 = smul.addr %s210, 24
          %s212 = scalar_lea.vmem [#allocation2], %s211
          %s213 = smul.u32 3, %s18
          %s215 = ssub.s32 384, 384
          %216 = vsyncadd %s209, %s215
          %s217 = smul.addr %s213, 128
          %s218 = scalar_lea.hbm %s0, %s217
          %s219 = sshll.u32 %s212, 4
          %s220 = int_to_ptr.vmem [resolvable:$true] %s219
          %225 = dma.hbm_to_vmem [thread:$0]  %s218, 384, %s220, %s209, 128, 128, 8
        $region36: #{tpu_custom_call.1} parent=31 // pred_fallthru
          _
      $region32: #{tpu_custom_call.1} parent=5 // pred_fallthru
        _
      %p226 = scmp.le.s32.totalorder 1, %s18
      %p227 = scmp.lt.s32.totalorder %s18, 3
      %p228 = pnand %p226, %p227
      %p229 = pneg %p228
      // Predicated region
      $region37: #{tpu_custom_call.1} parent=5 // pred_check
        _
      $region38: #{tpu_custom_call.1} parent=5 // pred_check_branch
        %231 = sbr.rel (%p228) target = $region40
      $region39: #{tpu_custom_call.1} parent=5 // pred_region
        %s232 = ssub.s32 %s18, 1
        %s233 = sand.u32 %s31, 1
        %s234 = scalar_lea.sflag [#allocation3], %s233
        %s235 = sand.u32 %s31, 1
        %s236 = smul.addr %s235, 24
        %s237 = scalar_lea.vmem [#allocation2], %s236
        // Predicated region
        $region41: #{tpu_custom_call.1} parent=39 // pred_check
          %p238 = pneg %p44
        $region42: #{tpu_custom_call.1} parent=39 // pred_check_branch
          %240 = sbr.rel (%p238) target = $region44
        $region43: #{tpu_custom_call.1} parent=39 // pred_region
          %241 = dma.done %s234, 384
        $region44: #{tpu_custom_call.1} parent=39 // pred_fallthru
          _
        // Predicated region
        $region45: #{tpu_custom_call.1} parent=39 // pred_check
          %p242 = pneg %p65
        $region46: #{tpu_custom_call.1} parent=39 // pred_check_branch
          %244 = sbr.rel (%p242) target = $region48
        $region47: #{tpu_custom_call.1} parent=39 // pred_region
          %245 = dma.done [#allocation6], 2048
        $region48: #{tpu_custom_call.1} parent=39 // pred_fallthru
          _
        // Predicated region
        $region49: #{tpu_custom_call.1} parent=39 // pred_check
          %p246 = pneg %p107
        $region50: #{tpu_custom_call.1} parent=39 // pred_check_branch
          %248 = sbr.rel (%p246) target = $region52
        $region51: #{tpu_custom_call.1} parent=39 // pred_region
          %249 = dma.done [#allocation6], 2048
        $region52: #{tpu_custom_call.1} parent=39 // pred_fallthru
          _
        %s250 = sand.u32 %s31, 1
        %s251 = scalar_lea.sflag [#allocation3], %s250
        %s252 = sand.u32 %s31, 1
        %s253 = smul.addr %s252, 24
        %s254 = scalar_lea.vmem [#allocation2], %s253
        %p255 = pneg %p44
        %p256 = pneg %p41
        %p257 = pneg %p65
        %p258 = pneg %p62
        %p259 = pneg %p86
        %p260 = pneg %p83
        %p261 = pneg %p107
        %p262 = pneg %p104
        %p263 = pneg %p128
        %p264 = pneg %p125
        %p265 = pneg %p154
        %p266 = pneg %p151
        %s267 = sand.u32 %s141, 1
        %s268 = scalar_lea.sflag [#allocation4], %s267
        %s269 = sand.u32 %s141, 1
        %s270 = smul.addr %s269, 24
        %s271 = scalar_lea.vmem [#allocation8], %s270
        %s272 = smul.u32 3, %s23
        %s273 = smul.u32 3, %s23
        %v274 = vld [vmem:[%s237] sm:$0xff]
        %v275 = vld [vmem:[%s237 + $0x8] sm:$0xff]
        %v276 = vld [vmem:[%s237 + $0x10] sm:$0xff]
        %v277 = vld [vmem:[#allocation5] sm:$0xff]
        %v278 = vld [vmem:[#allocation5 + $0x8] sm:$0xff]
        %v279 = vld [vmem:[#allocation5 + $0x10] sm:$0xff]
        %v280 = vld [vmem:[#allocation5 + $0x18] sm:$0xff]
        %v281 = vld [vmem:[#allocation5 + $0x20] sm:$0xff]
        %v282 = vld [vmem:[#allocation5 + $0x28] sm:$0xff]
        %v283 = vld [vmem:[#allocation5 + $0x30] sm:$0xff]
        %v284 = vld [vmem:[#allocation5 + $0x38] sm:$0xff]
        %v285 = vld [vmem:[#allocation5 + $0x40] sm:$0xff]
        %v286 = vld [vmem:[#allocation5 + $0x48] sm:$0xff]
        %v287 = vld [vmem:[#allocation5 + $0x50] sm:$0xff]
        %v288 = vld [vmem:[#allocation5 + $0x58] sm:$0xff]
        %v289 = vld [vmem:[#allocation5 + $0x60] sm:$0xff]
        %v290 = vld [vmem:[#allocation5 + $0x68] sm:$0xff]
        %v291 = vld [vmem:[#allocation5 + $0x70] sm:$0xff]
        %v292 = vld [vmem:[#allocation5 + $0x78] sm:$0xff]
        %v293 = vld [vmem:[%s2] sm:$0x1]
        %v295 = vlaneseq
        %v296 = vshrl.u32 %v295, 7
        %v297 = vsub.s32 0, %v296
        %v298 = vrot.slane %v293, %v297
        %300 = vmatprep.subr.mxu0 0.0
        %301 = vmatpush1.msra.mxu0 %v277
        %302 = vmatprep.subr.mxu0 0.0
        %303 = vmatpush1.msra.mxu0 %v278
        %304 = vmatprep.subr.mxu0 0.0
        %305 = vmatpush1.msra.mxu0 %v279
        %306 = vmatprep.subr.mxu0 0.0
        %307 = vmatpush1.msra.mxu0 %v280
        %308 = vmatprep.subr.mxu0 0.0
        %309 = vmatpush1.msra.mxu0 %v281
        %310 = vmatprep.subr.mxu0 0.0
        %311 = vmatpush1.msra.mxu0 %v282
        %312 = vmatprep.subr.mxu0 0.0
        %313 = vmatpush1.msra.mxu0 %v283
        %314 = vmatprep.subr.mxu0 0.0
        %315 = vmatpush1.msra.mxu0 %v284
        %316 = vmatprep.subr.mxu0 0.0
        %317 = vmatpush1.msra.mxu0 %v285
        %318 = vmatprep.subr.mxu0 0.0
        %319 = vmatpush1.msra.mxu0 %v286
        %320 = vmatprep.subr.mxu0 0.0
        %321 = vmatpush1.msra.mxu0 %v287
        %322 = vmatprep.subr.mxu0 0.0
        %323 = vmatpush1.msra.mxu0 %v288
        %324 = vmatprep.subr.mxu0 0.0
        %325 = vmatpush1.msra.mxu0 %v289
        %326 = vmatprep.subr.mxu0 0.0
        %327 = vmatpush1.msra.mxu0 %v290
        %328 = vmatprep.subr.mxu0 0.0
        %329 = vmatpush1.msra.mxu0 %v291
        %330 = vmatprep.subr.mxu0 0.0
        %331 = vmatpush1.msra.mxu0 %v292
        %332 = vmatprep.subr.mxu0 0.0
        %333 = vmatpush1.msra.mxu0 0.0
        %334 = vmatprep.subr.mxu0 0.0
        %335 = vmatpush1.msra.mxu0 0.0
        %336 = vmatprep.subr.mxu0 0.0
        %337 = vmatpush1.msra.mxu0 0.0
        %338 = vmatprep.subr.mxu0 0.0
        %339 = vmatpush1.msra.mxu0 0.0
        %340 = vmatprep.subr.mxu0 0.0
        %341 = vmatpush1.msra.mxu0 0.0
        %342 = vmatprep.subr.mxu0 0.0
        %343 = vmatpush1.msra.mxu0 0.0
        %344 = vmatprep.subr.mxu0 0.0
        %345 = vmatpush1.msra.mxu0 0.0
        %346 = vmatprep.subr.mxu0 0.0
        %347 = vmatpush1.msra.mxu0 0.0
        %348 = vmatprep.subr.mxu0 0.0
        %349 = vmatpush1.msra.mxu0 0.0
        %350 = vmatprep.subr.mxu0 0.0
        %351 = vmatpush1.msra.mxu0 0.0
        %352 = vmatprep.subr.mxu0 0.0
        %353 = vmatpush1.msra.mxu0 0.0
        %354 = vmatprep.subr.mxu0 0.0
        %355 = vmatpush1.msra.mxu0 0.0
        %356 = vmatprep.subr.mxu0 0.0
        %357 = vmatpush1.msra.mxu0 0.0
        %358 = vmatprep.subr.mxu0 0.0
        %359 = vmatpush1.msra.mxu0 0.0
        %360 = vmatprep.subr.mxu0 0.0
        %361 = vmatpush1.msra.mxu0 0.0
        %362 = vmatprep.subr.mxu0 0.0
        %363 = vmatpush1.msra.mxu0 0.0
        %364 = vmatprep.mubr.f32.mxu0 0.0
        %365 = vmatmul.mubr.f32.gmra.mrb[0].mxu0 %v274
        %v366 = vpop.f32.mrb[0].mxu0
        %v367 = vadd.f32 %v298, %v366
        %v368 = vpop.f32.mrb[0].mxu0
        %369 = vmatprep.mubr.f32.mxu0 0.0
        %370 = vmatmul.mubr.f32.gmra.mrb[0].mxu0 %v275
        %v371 = vpop.f32.mrb[0].mxu0
        %v372 = vadd.f32 %v298, %v371
        %v373 = vpop.f32.mrb[0].mxu0
        %374 = vmatprep.mubr.f32.mxu0 0.0
        %375 = vmatmul.mubr.f32.gmra.mrb[0].mxu0 %v276
        %v376 = vpop.f32.mrb[0].mxu0
        %v377 = vadd.f32 %v298, %v376
        %v378 = vpop.f32.mrb[0].mxu0
        %379 = vdwg.mxu0
        %v380 = vmax.f32 %v367, 0.0
        %v381 = vmax.f32 %v372, 0.0
        %v382 = vmax.f32 %v377, 0.0
        %v383 = vld [vmem:[#allocation7] sm:$0xff]
        %v384 = vld [vmem:[#allocation7 + $0x8] sm:$0xff]
        %v385 = vld [vmem:[#allocation7 + $0x10] sm:$0xff]
        %v386 = vld [vmem:[#allocation7 + $0x18] sm:$0xff]
        %v387 = vld [vmem:[#allocation7 + $0x20] sm:$0xff]
        %v388 = vld [vmem:[#allocation7 + $0x28] sm:$0xff]
        %v389 = vld [vmem:[#allocation7 + $0x30] sm:$0xff]
        %v390 = vld [vmem:[#allocation7 + $0x38] sm:$0xff]
        %v391 = vld [vmem:[#allocation7 + $0x40] sm:$0xff]
        %v392 = vld [vmem:[#allocation7 + $0x48] sm:$0xff]
        %v393 = vld [vmem:[#allocation7 + $0x50] sm:$0xff]
        %v394 = vld [vmem:[#allocation7 + $0x58] sm:$0xff]
        %v395 = vld [vmem:[#allocation7 + $0x60] sm:$0xff]
        %v396 = vld [vmem:[#allocation7 + $0x68] sm:$0xff]
        %v397 = vld [vmem:[#allocation7 + $0x70] sm:$0xff]
        %v398 = vld [vmem:[#allocation7 + $0x78] sm:$0xff]
        %v399 = vld [vmem:[%s4] sm:$0x1]
        %v401 = vlaneseq
        %v402 = vshrl.u32 %v401, 7
        %v403 = vsub.s32 0, %v402
        %v404 = vrot.slane %v399, %v403
        %406 = vmatprep.subr.mxu0 0.0
        %407 = vmatpush1.msra.mxu0 %v383
        %408 = vmatprep.subr.mxu0 0.0
        %409 = vmatpush1.msra.mxu0 %v384
        %410 = vmatprep.subr.mxu0 0.0
        %411 = vmatpush1.msra.mxu0 %v385
        %412 = vmatprep.subr.mxu0 0.0
        %413 = vmatpush1.msra.mxu0 %v386
        %414 = vmatprep.subr.mxu0 0.0
        %415 = vmatpush1.msra.mxu0 %v387
        %416 = vmatprep.subr.mxu0 0.0
        %417 = vmatpush1.msra.mxu0 %v388
        %418 = vmatprep.subr.mxu0 0.0
        %419 = vmatpush1.msra.mxu0 %v389
        %420 = vmatprep.subr.mxu0 0.0
        %421 = vmatpush1.msra.mxu0 %v390
        %422 = vmatprep.subr.mxu0 0.0
        %423 = vmatpush1.msra.mxu0 %v391
        %424 = vmatprep.subr.mxu0 0.0
        %425 = vmatpush1.msra.mxu0 %v392
        %426 = vmatprep.subr.mxu0 0.0
        %427 = vmatpush1.msra.mxu0 %v393
        %428 = vmatprep.subr.mxu0 0.0
        %429 = vmatpush1.msra.mxu0 %v394
        %430 = vmatprep.subr.mxu0 0.0
        %431 = vmatpush1.msra.mxu0 %v395
        %432 = vmatprep.subr.mxu0 0.0
        %433 = vmatpush1.msra.mxu0 %v396
        %434 = vmatprep.subr.mxu0 0.0
        %435 = vmatpush1.msra.mxu0 %v397
        %436 = vmatprep.subr.mxu0 0.0
        %437 = vmatpush1.msra.mxu0 %v398
        %438 = vmatprep.subr.mxu0 0.0
        %439 = vmatpush1.msra.mxu0 0.0
        %440 = vmatprep.subr.mxu0 0.0
        %441 = vmatpush1.msra.mxu0 0.0
        %442 = vmatprep.subr.mxu0 0.0
        %443 = vmatpush1.msra.mxu0 0.0
        %444 = vmatprep.subr.mxu0 0.0
        %445 = vmatpush1.msra.mxu0 0.0
        %446 = vmatprep.subr.mxu0 0.0
        %447 = vmatpush1.msra.mxu0 0.0
        %448 = vmatprep.subr.mxu0 0.0
        %449 = vmatpush1.msra.mxu0 0.0
        %450 = vmatprep.subr.mxu0 0.0
        %451 = vmatpush1.msra.mxu0 0.0
        %452 = vmatprep.subr.mxu0 0.0
        %453 = vmatpush1.msra.mxu0 0.0
        %454 = vmatprep.subr.mxu0 0.0
        %455 = vmatpush1.msra.mxu0 0.0
        %456 = vmatprep.subr.mxu0 0.0
        %457 = vmatpush1.msra.mxu0 0.0
        %458 = vmatprep.subr.mxu0 0.0
        %459 = vmatpush1.msra.mxu0 0.0
        %460 = vmatprep.subr.mxu0 0.0
        %461 = vmatpush1.msra.mxu0 0.0
        %462 = vmatprep.subr.mxu0 0.0
        %463 = vmatpush1.msra.mxu0 0.0
        %464 = vmatprep.subr.mxu0 0.0
        %465 = vmatpush1.msra.mxu0 0.0
        %466 = vmatprep.subr.mxu0 0.0
        %467 = vmatpush1.msra.mxu0 0.0
        %468 = vmatprep.subr.mxu0 0.0
        %469 = vmatpush1.msra.mxu0 0.0
        %470 = vmatprep.mubr.f32.mxu0 0.0
        %471 = vmatmul.mubr.f32.gmra.mrb[0].mxu0 %v380
        %v472 = vpop.f32.mrb[0].mxu0
        %v473 = vadd.f32 %v404, %v472
        %v474 = vpop.f32.mrb[0].mxu0
        %475 = vmatprep.mubr.f32.mxu0 0.0
        %476 = vmatmul.mubr.f32.gmra.mrb[0].mxu0 %v381
        %v477 = vpop.f32.mrb[0].mxu0
        %v478 = vadd.f32 %v404, %v477
        %v479 = vpop.f32.mrb[0].mxu0
        %480 = vmatprep.mubr.f32.mxu0 0.0
        %481 = vmatmul.mubr.f32.gmra.mrb[0].mxu0 %v382
        %v482 = vpop.f32.mrb[0].mxu0
        %v483 = vadd.f32 %v404, %v482
        %v484 = vpop.f32.mrb[0].mxu0
        %485 = vdwg.mxu0
        %v486 = vxor.u32 %v473, 2147483648
        %v487 = vxor.u32 %v478, 2147483648
        %v488 = vxor.u32 %v483, 2147483648
        %v489 = vmul.f32 %v486, 1.442695
        %v490 = vpow.pop %v489
        %v491 = vmul.f32 %v487, 1.442695
        %v492 = vpow.pop %v491
        %v493 = vmul.f32 %v488, 1.442695
        %v494 = vpow.pop %v493
        %v495 = vadd.f32 %v490, 1.0
        %v496 = vadd.f32 %v492, 1.0
        %v497 = vadd.f32 %v494, 1.0
        %v498 = vrcp.pop %v495
        %v499 = vmul.f32 1.0, %v498
        %v500 = vrcp.pop %v496
        %v501 = vmul.f32 1.0, %v500
        %v502 = vrcp.pop %v497
        %v503 = vmul.f32 1.0, %v502
        %504 = vst [vmem:[%s271] sm:$0xff] %v499
        %505 = vst [vmem:[%s271 + $0x8] sm:$0xff] %v501
        %506 = vst [vmem:[%s271 + $0x10] sm:$0xff] %v503
        %s507 = sand.u32 %s141, 1
        %s508 = scalar_lea.sflag [#allocation4], %s507
        %s509 = sand.u32 %s141, 1
        %s510 = smul.addr %s509, 24
        %s511 = scalar_lea.vmem [#allocation8], %s510
        // Predicated region
        $region53: #{tpu_custom_call.1} parent=39 // pred_check
          %p512 = pneg %p151
        $region54: #{tpu_custom_call.1} parent=39 // pred_check_branch
          %514 = sbr.rel (%p512) target = $region56
        $region55: #{tpu_custom_call.1} parent=39 // pred_region
          %s515 = smul.u32 3, %s23
          %s517 = ssub.s32 384, 384
          %518 = vsyncadd %s508, %s517
          %s519 = smul.addr %s515, 128
          %s520 = scalar_lea.hbm %s5, %s519
          %s521 = sshll.u32 %s511, 4
          %s522 = int_to_ptr.vmem [resolvable:$true] %s521
          %527 = dma.vmem_to_hbm [thread:$0]  %s522, 384, %s520, %s508, 128, 128, 8
        $region56: #{tpu_custom_call.1} parent=39 // pred_fallthru
          _
      $region40: #{tpu_custom_call.1} parent=5 // pred_fallthru
        _
      %p528 = scmp.le.s32.totalorder 2, %s18
      // Predicated region
      $region57: #{tpu_custom_call.1} parent=5 // pred_check
        %p529 = pneg %p528
      $region58: #{tpu_custom_call.1} parent=5 // pred_check_branch
        %531 = sbr.rel (%p529) target = $region60
      $region59: #{tpu_custom_call.1} parent=5 // pred_region
        %s532 = ssub.s32 %s18, 2
        // Predicated region
        $region61: #{tpu_custom_call.1} parent=59 // pred_check
          %p533 = pneg %p157
        $region62: #{tpu_custom_call.1} parent=59 // pred_check_branch
          %535 = sbr.rel (%p533) target = $region64
        $region63: #{tpu_custom_call.1} parent=59 // pred_region
          %s536 = sand.u32 %s142, 1
          %s537 = scalar_lea.sflag [#allocation4], %s536
          %s538 = sand.u32 %s142, 1
          %s539 = smul.addr %s538, 24
          %s540 = scalar_lea.vmem [#allocation8], %s539
          %541 = dma.done %s537, 384
        $region64: #{tpu_custom_call.1} parent=59 // pred_fallthru
          _
      $region60: #{tpu_custom_call.1} parent=5 // pred_fallthru
        _
    $region6: #{tpu_custom_call.1} parent=1 // loop_footer
      %s22 = sadd.s32 1, %s18
    $region7: #{tpu_custom_call.1} parent=1 // loop_footer_branch
      %17 = sbr.rel target = $region3
    $region8: #{tpu_custom_call.1} parent=1 // loop_exit
      _
    %542 = vsyncpa [#allocation3], 1
    %s543 = scalar_lea.sflag [#allocation3], 1
    %544 = vsyncpa %s543, 1
    %545 = vsyncpa [#allocation6], 1
    %546 = vsyncpa [#allocation4], 1
    %s547 = scalar_lea.sflag [#allocation4], 1
    %548 = vsyncpa %s547, 1

</llo_original>
